<compile_context>
chip_gen: v6e
topology: v6e:2x2x1
jax: 0.10.0
libtpu: 0.0.40
codegen_flags: <defaults>
</compile_context>

<pallas_src>
import jax
import jax.numpy as jnp
from jax.experimental import pallas as pl
from jax.experimental.pallas import tpu as pltpu

# Fixed backlash constants (the module hard-codes them; nothing learned).
M_LO = 2.0
M_UP = 1.8
C_LO = 0.5
C_UP = -0.5
B_LO = M_LO * C_LO   # = 1.0  (m_lo*c_lo, folded at trace time)
B_UP = M_UP * C_UP   # = -0.9 (m_up*c_up, folded at trace time)

LANES = 128


def _backlash_kernel(x_ref, prev_ref, out_ref):
    x = x_ref[...]
    prev = prev_ref[...]

    xm_lo = M_LO * x
    xm_up = M_UP * x
    t1 = xm_lo + B_LO            # m_lo*x + m_lo*c_lo
    t2 = xm_up + B_UP            # m_up*x + m_up*c_up

    # Dividing by the positive constants m_lo/m_up never changes the sign, so
    # the h(.) <= 0 tests reduce to direct comparisons (no divides):
    #   f1 == 1  <=>  (m_lo*x + m_lo*c_lo - prev) <= 0  <=>  t1 <= prev
    #   f2 == 1  <=>  (prev - m_up*x - m_up*c_up) <= 0  <=>  (prev - m_up*x) <= m_up*c_up
    c1 = t1 <= prev
    c2 = (prev - xm_up) <= B_UP

    zero = jnp.zeros_like(x)
    out = (jnp.where(c1, t1, zero)
           + jnp.where(c2, t2, zero)
           + jnp.where(jnp.logical_or(c1, c2), zero, prev))
    out_ref[...] = out.astype(out_ref.dtype)


def _sublane_multiple(dtype):
    # Packed-tile minimum second-minor size per element width.
    itemsize = jnp.dtype(dtype).itemsize
    return {4: 8, 2: 16, 1: 32}.get(itemsize, 8)


def fixed_backlash(x, out_prev, *, max_row_tile=8192, donate_x=False):
    """x, out_prev: float arrays (e.g. NCHW) of identical shape."""
    assert x.shape == out_prev.shape
    orig_shape = x.shape
    dtype = x.dtype
    n_elem = x.size
    sub = _sublane_multiple(dtype)

    # ---- Build a lane-dense (rows, 128) view. ------------------------------
    # A contiguous reshape is metadata-only, so whenever n_elem % 128 == 0 the
    # kernel sees the original buffers with zero extra HBM passes. Only truly
    # ragged sizes pay one pad copy (and an output slice).
    n_pad = (-n_elem) % LANES
    x_flat = x.reshape(-1)
    p_flat = out_prev.reshape(-1)
    if n_pad > 0:
        # TODO(synk): for ragged sizes the last <128 elements could be computed
        # with plain jnp instead of paying a full pad copy of both inputs.
        x_flat = jnp.pad(x_flat, (0, n_pad))
        p_flat = jnp.pad(p_flat, (0, n_pad))
    rows = (n_elem + n_pad) // LANES
    x2 = x_flat.reshape(rows, LANES)
    p2 = p_flat.reshape(rows, LANES)

    # ---- Tile selection. ----------------------------------------------------
    if rows <= max_row_tile:
        # Single block: a full-extent block shape is always legal regardless of
        # sublane alignment; no forced split (it only costs extra steps on
        # single-TC v5e/v6e).
        row_tile = rows
        n_steps = 1
    else:
        n_steps = pl.cdiv(rows, max_row_tile)
        # Small odd step counts leave one v7x TensorCore with up to 50% more
        # work; even them out. With >= 8 steps the imbalance is negligible.
        if n_steps < 8 and n_steps % 2 == 1:
            n_steps += 1
        row_tile = -(-pl.cdiv(rows, n_steps) // sub) * sub
        n_steps = pl.cdiv(rows, row_tile)   # partial trailing block is masked

    call_kwargs = {}
    if donate_x:
        # Out has identical shape/dtype; aliasing trims HBM buffer churn when
        # backlash is applied per timestep in a stateful loop.
        call_kwargs["input_output_aliases"] = {0: 0}

    out2 = pl.pallas_call(
        _backlash_kernel,
        out_shape=jax.ShapeDtypeStruct((rows, LANES), dtype),
        grid_spec=pltpu.PrefetchScalarGridSpec(
            num_scalar_prefetch=0,
            grid=(n_steps,),
            in_specs=[
                pl.BlockSpec((row_tile, LANES), lambda i: (i, 0)),
                pl.BlockSpec((row_tile, LANES), lambda i: (i, 0)),
            ],
            out_specs=pl.BlockSpec((row_tile, LANES), lambda i: (i, 0)),
        ),
        compiler_params=pltpu.CompilerParams(
            dimension_semantics=("parallel",),
            # 24 MiB double-buffered footprint at the largest f32 tile; 32 MiB
            # is safe on every generation (v5e default scoped limit is 16 MiB,
            # v7x physical VMEM is 64 MiB/TC).
            vmem_limit_bytes=32 * 1024 * 1024),
        **call_kwargs,
    )(x2, p2)

    out_flat = out2.reshape(-1)
    if n_pad > 0:
        out_flat = out_flat[:n_elem]
    return out_flat.reshape(orig_shape)


def _reference(x, out_prev):
    # Pure-JAX reference mirroring the PyTorch forward exactly.
    def h(s):
        return jnp.where(s <= 0.0, 1.0, 0.0).astype(s.dtype)

    f1 = h((M_LO * x + M_LO * C_LO - out_prev) / M_LO)
    f2 = h((out_prev - M_UP * x - M_UP * C_UP) / M_UP)
    return (M_LO * x * f1 + M_LO * C_LO * f1
            + M_UP * x * f2 + M_UP * C_UP * f2
            + out_prev * (1.0 - f1) * (1.0 - f2))


if __name__ == "__main__":
    key = jax.random.PRNGKey(0)
    k1, k2, k3, k4, k5, k6 = jax.random.split(key, 6)

    # Primary case: small NCHW shape, lane-dense (zero-copy path, one block).
    x = jax.random.normal(k1, (2, 4, 16, 16), dtype=jnp.float32)
    out_prev = jax.random.normal(k2, (2, 4, 16, 16), dtype=jnp.float32)
    out = jax.block_until_ready(fixed_backlash(x, out_prev))
    ref = _reference(x, out_prev)
    assert out.shape == x.shape
    assert jnp.allclose(out, ref, atol=1e-6, rtol=1e-6), "mismatch (aligned)"

    # Ragged case: exercises the pad fallback (n_elem % 128 != 0).
    xr = jax.random.normal(k3, (3, 5, 7), dtype=jnp.float32)
    pr = jax.random.normal(k4, (3, 5, 7), dtype=jnp.float32)
    outr = jax.block_until_ready(fixed_backlash(xr, pr))
    assert jnp.allclose(outr, _reference(xr, pr), atol=1e-6, rtol=1e-6), \
        "mismatch (ragged)"

    # Multi-block case with a partial trailing block (tiny max_row_tile to
    # exercise the cdiv grid path cheaply): rows=12, row_tile=8 -> 2 steps.
    xm = jax.random.normal(k5, (2, 3, 16, 16), dtype=jnp.float32)
    pm = jax.random.normal(k6, (2, 3, 16, 16), dtype=jnp.float32)
    outm = jax.block_until_ready(fixed_backlash(xm, pm, max_row_tile=8))
    assert jnp.allclose(outm, _reference(xm, pm), atol=1e-6, rtol=1e-6), \
        "mismatch (partial block)"

    print("KERNEL_OK")
</pallas_src>

<mosaic_0001>
module attributes {stable_mosaic.version = 11 : i64} {
  func.func @_backlash_kernel(%arg0: i32, %arg1: memref<16x128xf32, #tpu.memory_space<vmem>>, %arg2: memref<16x128xf32, #tpu.memory_space<vmem>>, %arg3: memref<16x128xf32, #tpu.memory_space<vmem>>) attributes {dimension_semantics = [#tpu.dimension_semantics<parallel>], iteration_bounds = array<i64: 1>, scalar_prefetch = 0 : i64, scratch_operands = 0 : i64, tpu.core_type = #tpu.core_type<tc>, window_params = [{transform_indices = @transform_0, window_bounds = array<i64: 16, 128>}, {transform_indices = @transform_1, window_bounds = array<i64: 16, 128>}, {transform_indices = @transform_2, window_bounds = array<i64: 16, 128>}]} {
    %c0 = arith.constant 0 : index
    %c0_0 = arith.constant 0 : index
    %0 = vector.load %arg1[%c0, %c0_0] : memref<16x128xf32, #tpu.memory_space<vmem>>, vector<16x128xf32>
    %c0_1 = arith.constant 0 : index
    %c0_2 = arith.constant 0 : index
    %1 = vector.load %arg2[%c0_1, %c0_2] : memref<16x128xf32, #tpu.memory_space<vmem>>, vector<16x128xf32>
    %cst = arith.constant 2.000000e+00 : f32
    %2 = vector.broadcast %cst : f32 to vector<16x128xf32>
    %3 = arith.mulf %2, %0 : vector<16x128xf32>
    %cst_3 = arith.constant 1.800000e+00 : f32
    %4 = vector.broadcast %cst_3 : f32 to vector<16x128xf32>
    %5 = arith.mulf %4, %0 : vector<16x128xf32>
    %cst_4 = arith.constant 1.000000e+00 : f32
    %6 = vector.broadcast %cst_4 : f32 to vector<16x128xf32>
    %7 = arith.addf %3, %6 : vector<16x128xf32>
    %cst_5 = arith.constant -0.899999976 : f32
    %8 = vector.broadcast %cst_5 : f32 to vector<16x128xf32>
    %9 = arith.addf %5, %8 : vector<16x128xf32>
    %10 = arith.cmpf ole, %7, %1 : vector<16x128xf32>
    %11 = arith.subf %1, %5 : vector<16x128xf32>
    %cst_6 = arith.constant -0.899999976 : f32
    %12 = vector.broadcast %cst_6 : f32 to vector<16x128xf32>
    %13 = arith.cmpf ole, %11, %12 : vector<16x128xf32>
    %cst_7 = arith.constant 0.000000e+00 : f32
    %14 = vector.broadcast %cst_7 : f32 to vector<16x128xf32>
    %15 = arith.select %10, %7, %14 : vector<16x128xi1>, vector<16x128xf32>
    %16 = arith.select %13, %9, %14 : vector<16x128xi1>, vector<16x128xf32>
    %17 = arith.addf %15, %16 : vector<16x128xf32>
    %18 = arith.ori %10, %13 : vector<16x128xi1>
    %19 = arith.select %18, %14, %1 : vector<16x128xi1>, vector<16x128xf32>
    %20 = arith.addf %17, %19 : vector<16x128xf32>
    %c0_8 = arith.constant 0 : index
    %c0_9 = arith.constant 0 : index
    %21 = vector.load %arg3[%c0_8, %c0_9] : memref<16x128xf32, #tpu.memory_space<vmem>>, vector<16x128xf32>
    tpu.vector_store %arg3[%c0_8, %c0_9], %20 {strides = array<i32>} : memref<16x128xf32, #tpu.memory_space<vmem>>, vector<16x128xf32>,
    return
  }
  func.func @transform_0(%arg0: i32) -> (i32, i32) {
    %c0_i32 = arith.constant 0 : i32
    %c0_i32_0 = arith.constant 0 : i32
    return %arg0, %c0_i32 : i32, i32
  }
  func.func @transform_1(%arg0: i32) -> (i32, i32) {
    %c0_i32 = arith.constant 0 : i32
    %c0_i32_0 = arith.constant 0 : i32
    return %arg0, %c0_i32 : i32, i32
  }
  func.func @transform_2(%arg0: i32) -> (i32, i32) {
    %c0_i32 = arith.constant 0 : i32
    %c0_i32_0 = arith.constant 0 : i32
    return %arg0, %c0_i32 : i32, i32
  }
}

</mosaic_0001>

<llo_original>
// kernel: tpu_custom_call.1
$region0: #{tpu_custom_call.1}
  #allocation0 [shape = 'u32[]', space=smem, size = 0x4, offset = 0x4, fixed_abs, tag = 'smem constant byte address 0x4 - core index']
  #allocation1 [shape = 'u32[144,128]{1,0:T(1,128)}', space=vmem, size = 0x12000, scoped, tag = 'internal scratch']
  %s0 = inlined_call_operand.hbm [shape: f32[16,128], index: 0, kind: input, shape index: {}]
  %s1 = inlined_call_operand.hbm [shape: f32[16,128], index: 1, kind: input, shape index: {}]
  %s2 = inlined_call_operand.hbm [shape: f32[16,128], index: 2, kind: output, shape index: {}]
  %s3 = sld [smem:[#allocation0]]
  $region26: #{tpu_custom_call.1} parent=0
    _
  %s5 = ssub.s32 1, %s3
  %s6 = scalar_select 0, %s5, %s3
  $region1: #{tpu_custom_call.1} parent=0
    #allocation2 [shape = 'u8[8192]{0}', space=vmem, size = 0x2000, scoped, tag = 'input window, operand 0, single buffered']
    #allocation3 [shape = 's32[1]{0}', space=sflag, size = 0x4, scoped, tag = 'scoped memory for tpu_custom_call.1']
    #allocation4 [shape = 's32[1]{0}', space=sflag, size = 0x4, scoped, tag = 'scoped memory for tpu_custom_call.1']
    #allocation5 [shape = 'u8[8192]{0}', space=vmem, size = 0x2000, scoped, tag = 'input window, operand 1, single buffered']
    #allocation6 [shape = 's32[1]{0}', space=sflag, size = 0x4, scoped, tag = 'scoped memory for tpu_custom_call.1']
    #allocation7 [shape = 'u8[8192]{0}', space=vmem, size = 0x2000, scoped, tag = 'output window, operand 0, single buffered']
    %7 = vsyncpa [#allocation3], 0
    %8 = vsyncpa [#allocation6], 0
    %9 = vsyncpa [#allocation4], 0
    // Predicated region
    $region2: #{tpu_custom_call.1} parent=1 // pred_check
      _
    $region3: #{tpu_custom_call.1} parent=1 // pred_check_branch
      %11 = sbr.rel (0) target = $region5
    $region4: #{tpu_custom_call.1} parent=1 // pred_region
      %s13 = ssub.s32 256, 256
      %14 = vsyncadd [#allocation3], %s13
      %s15 = sshll.u32 [#allocation2], 4
      %s16 = int_to_ptr.vmem [resolvable:$true] %s15
      %21 = dma.hbm_to_vmem [thread:$0]  %s0, 256, %s16, [#allocation3], 128, 128, 8
    $region5: #{tpu_custom_call.1} parent=1 // pred_fallthru
      _
    // Predicated region
    $region6: #{tpu_custom_call.1} parent=1 // pred_check
      _
    $region7: #{tpu_custom_call.1} parent=1 // pred_check_branch
      %23 = sbr.rel (0) target = $region9
    $region8: #{tpu_custom_call.1} parent=1 // pred_region
      %s25 = ssub.s32 256, 256
      %26 = vsyncadd [#allocation6], %s25
      %s27 = sshll.u32 [#allocation5], 4
      %s28 = int_to_ptr.vmem [resolvable:$true] %s27
      %33 = dma.hbm_to_vmem [thread:$0]  %s1, 256, %s28, [#allocation6], 128, 128, 8
    $region9: #{tpu_custom_call.1} parent=1 // pred_fallthru
      _
    // Predicated region
    $region10: #{tpu_custom_call.1} parent=1 // pred_check
      _
    $region11: #{tpu_custom_call.1} parent=1 // pred_check_branch
      %35 = sbr.rel (0) target = $region13
    $region12: #{tpu_custom_call.1} parent=1 // pred_region
      %36 = dma.done [#allocation3], 256
    $region13: #{tpu_custom_call.1} parent=1 // pred_fallthru
      _
    // Predicated region
    $region14: #{tpu_custom_call.1} parent=1 // pred_check
      _
    $region15: #{tpu_custom_call.1} parent=1 // pred_check_branch
      %38 = sbr.rel (0) target = $region17
    $region16: #{tpu_custom_call.1} parent=1 // pred_region
      %39 = dma.done [#allocation6], 256
    $region17: #{tpu_custom_call.1} parent=1 // pred_fallthru
      _
    %v40 = vld [vmem:[#allocation2] sm:$0xff]
    %v41 = vld [vmem:[#allocation2 + $0x8] sm:$0xff]
    %v42 = vld [vmem:[#allocation5] sm:$0xff]
    %v43 = vld [vmem:[#allocation5 + $0x8] sm:$0xff]
    %v44 = vmul.f32 %v40, 2.0
    %v45 = vmul.f32 %v41, 2.0
    %v46 = vmul.f32 %v40, 1.8
    %v47 = vmul.f32 %v41, 1.8
    %v48 = vadd.f32 %v44, 1.0
    %v49 = vadd.f32 %v45, 1.0
    %v50 = vadd.f32 %v46, -0.9
    %v51 = vadd.f32 %v47, -0.9
    %vm52 = vcmp.le.f32.partialorder %v48, %v42
    %vm53 = vcmp.le.f32.partialorder %v49, %v43
    %v54 = vsub.f32 %v42, %v46
    %v55 = vsub.f32 %v43, %v47
    %vm56 = vcmp.le.f32.partialorder %v54, -0.9
    %vm57 = vcmp.le.f32.partialorder %v55, -0.9
    %v58 = vsel %vm52, %v48, 0.0
    %v59 = vsel %vm53, %v49, 0.0
    %v60 = vsel %vm56, %v50, 0.0
    %v61 = vsel %vm57, %v51, 0.0
    %v62 = vadd.f32 %v58, %v60
    %v63 = vadd.f32 %v59, %v61
    %vm64 = vmor %vm52, %vm56
    %vm65 = vmor %vm53, %vm57
    %v66 = vsel %vm64, 0.0, %v42
    %v67 = vsel %vm65, 0.0, %v43
    %v68 = vadd.f32 %v62, %v66
    %v69 = vadd.f32 %v63, %v67
    %70 = vst [vmem:[#allocation7] sm:$0xff] %v68
    %71 = vst [vmem:[#allocation7 + $0x8] sm:$0xff] %v69
    // Predicated region
    $region18: #{tpu_custom_call.1} parent=1 // pred_check
      _
    $region19: #{tpu_custom_call.1} parent=1 // pred_check_branch
      %73 = sbr.rel (0) target = $region21
    $region20: #{tpu_custom_call.1} parent=1 // pred_region
      %s75 = ssub.s32 256, 256
      %76 = vsyncadd [#allocation4], %s75
      %s77 = sshll.u32 [#allocation7], 4
      %s78 = int_to_ptr.vmem [resolvable:$true] %s77
      %83 = dma.vmem_to_hbm [thread:$0]  %s78, 256, %s2, [#allocation4], 128, 128, 8
    $region21: #{tpu_custom_call.1} parent=1 // pred_fallthru
      _
    // Predicated region
    $region22: #{tpu_custom_call.1} parent=1 // pred_check
      _
    $region23: #{tpu_custom_call.1} parent=1 // pred_check_branch
      %85 = sbr.rel (0) target = $region25
    $region24: #{tpu_custom_call.1} parent=1 // pred_region
      %86 = dma.done [#allocation4], 256
    $region25: #{tpu_custom_call.1} parent=1 // pred_fallthru
      _
    %87 = vsyncpa [#allocation3], 1
    %88 = vsyncpa [#allocation6], 1
    %89 = vsyncpa [#allocation4], 1

</llo_original>
